<compile_context>
chip_gen: v5e
topology: v5e:2x2
jax: 0.10.0
libtpu: 0.0.40
codegen_flags: <defaults>
</compile_context>

<pallas_src>
import math

import jax
import jax.numpy as jnp
from jax.experimental import pallas as pl
from jax.experimental.pallas import tpu as pltpu

BN_EPS = 1e-5
LANE = 128


def _round_up(n, m):
    return ((n + m - 1) // m) * m


# --------------------------------------------------------------------------- #
# Kernel: x @ w1 + b1 -> relu -> @ w2' + b2' -> relu -> @ w3' + b3'
# (BN folded into w2'/b2' and w3'/b3'; dropout is identity in eval mode)
# --------------------------------------------------------------------------- #
def regressor_kernel(x_ref, w1_ref, b1_ref, w2_ref, b2_ref, w3_ref, b3_ref, o_ref):
    x = x_ref[...]                                                   # (TB, M) bf16

    # fc1 + relu   (bias/ReLU in f32)
    h1 = jnp.dot(x, w1_ref[...], preferred_element_type=jnp.float32) + b1_ref[...]
    h1 = jnp.maximum(h1, 0.0)

    # fc2 (BN1 folded) + relu
    h2 = jnp.dot(h1.astype(w2_ref.dtype), w2_ref[...],
                 preferred_element_type=jnp.float32) + b2_ref[...]
    h2 = jnp.maximum(h2, 0.0)

    # fc3 (BN2 folded, lane-padded to a 128-wide output slab)
    out = jnp.dot(h2.astype(w3_ref.dtype), w3_ref[...],
                  preferred_element_type=jnp.float32) + b3_ref[...]
    o_ref[...] = out.astype(o_ref.dtype)


# --------------------------------------------------------------------------- #
# Wrapper
# --------------------------------------------------------------------------- #
def regressor_forward(x, fused_params, num_aux_task, *, block_b=128):
    """x: (B, molvec_dim) f32.  fused_params from `fold_and_pad_params`.

    Returns torch.squeeze-equivalent of the (B, num_aux_task) result.
    """
    w1, b1, w2, b2, w3, b3 = fused_params
    B, M = x.shape
    A_pad = w3.shape[1]

    # Batch tiling: TB is a multiple of 8; pad B up so the grid divides evenly.
    TB = min(block_b, _round_up(B, 8))
    B_pad = _round_up(B, TB)
    nb = B_pad // TB

    xc = x.astype(w1.dtype)                      # bf16 matmul operand
    if B_pad != B:
        xc = jnp.pad(xc, ((0, B_pad - B), (0, 0)))

    def resident(shape):
        # weights/biases: one block == whole array, same block every grid step
        return pl.BlockSpec(shape, lambda i: tuple(0 for _ in shape))

    out = pl.pallas_call(
        regressor_kernel,
        out_shape=jax.ShapeDtypeStruct((B_pad, A_pad), jnp.float32),
        grid=(nb,),
        in_specs=[
            pl.BlockSpec((TB, M), lambda i: (i, 0)),     # x: tiled on batch
            resident(w1.shape), resident(b1.shape),
            resident(w2.shape), resident(b2.shape),
            resident(w3.shape), resident(b3.shape),
        ],
        out_specs=pl.BlockSpec((TB, A_pad), lambda i: (i, 0)),
        compiler_params=pltpu.CompilerParams(dimension_semantics=("parallel",)),
    )(xc, w1, b1, w2, b2, w3, b3)

    # Layout plumbing stays in the wrapper: un-pad batch, slice the lane-dense
    # output slab back to num_aux_task, then mirror torch.squeeze.
    return jnp.squeeze(out[:B, :num_aux_task])


# --------------------------------------------------------------------------- #
# Parameter construction (mirrors the PyTorch module init) + offline folding
# --------------------------------------------------------------------------- #
def xavier_normal(key, fan_in, fan_out):
    # nn.init.xavier_normal_ on a (out, in) weight; returned already transposed
    # to (in, out) for the kernel layout.
    std = math.sqrt(2.0 / (fan_in + fan_out))
    return std * jax.random.normal(key, (fan_in, fan_out), dtype=jnp.float32)


def make_raw_params(key, molvec_dim, classifier_dim, num_aux_task):
    c2 = classifier_dim // 2
    keys = jax.random.split(key, 6)

    w1 = xavier_normal(keys[0], molvec_dim, classifier_dim)
    w2 = xavier_normal(keys[1], classifier_dim, c2)
    w3 = xavier_normal(keys[2], c2, num_aux_task)

    # Linear biases (deterministic small values; PyTorch default init is
    # uniform and not touched by param_initializer).
    b1 = 0.01 * jax.random.normal(keys[3], (1, classifier_dim), dtype=jnp.float32)
    b2 = 0.01 * jax.random.normal(keys[4], (1, c2), dtype=jnp.float32)
    b3 = 0.01 * jax.random.normal(keys[5], (1, num_aux_task), dtype=jnp.float32)

    # BatchNorm1d eval-mode params: gamma=1, beta=0, running_mean=0, running_var=1
    g1 = jnp.ones((1, classifier_dim), jnp.float32)
    be1 = jnp.zeros((1, classifier_dim), jnp.float32)
    m1 = jnp.zeros((1, classifier_dim), jnp.float32)
    v1 = jnp.ones((1, classifier_dim), jnp.float32)

    g2 = jnp.ones((1, c2), jnp.float32)
    be2 = jnp.zeros((1, c2), jnp.float32)
    m2 = jnp.zeros((1, c2), jnp.float32)
    v2 = jnp.ones((1, c2), jnp.float32)

    return (w1, b1, w2, b2, w3, b3, g1, be1, m1, v1, g2, be2, m2, v2)


def fold_and_pad_params(raw_params, *, compute_dtype=jnp.bfloat16):
    """Fold eval-mode BN into the next linear layer and lane-pad the output head.

    bn(h) @ W + b  ==  (s*h + (beta - s*m)) @ W + b
                   ==  h @ (diag(s) @ W) + ((beta - s*m) @ W + b)
    which is exact because BN is affine and sits between ReLU and the matmul.
    """
    (w1, b1, w2, b2, w3, b3,
     g1, be1, m1, v1, g2, be2, m2, v2) = raw_params

    s1 = g1 * jax.lax.rsqrt(v1 + BN_EPS)            # (1, C)
    w2f = w2 * s1.T                                  # scale rows of w2
    b2f = (be1 - s1 * m1) @ w2 + b2

    s2 = g2 * jax.lax.rsqrt(v2 + BN_EPS)             # (1, C//2)
    w3f = w3 * s2.T
    b3f = (be2 - s2 * m2) @ w3 + b3

    # Lane-dense output: zero-pad the output projection to a multiple of 128
    # so the kernel's output store is a full (unmasked) vector store.
    c2, a = w3f.shape
    a_pad = max(LANE, _round_up(a, LANE))
    w3p = jnp.zeros((c2, a_pad), jnp.float32).at[:, :a].set(w3f)
    b3p = jnp.zeros((1, a_pad), jnp.float32).at[:, :a].set(b3f)

    # bf16 MXU operands; biases stay f32 (added to the f32 accumulator).
    cd = compute_dtype
    return (w1.astype(cd), b1, w2f.astype(cd), b2f, w3p.astype(cd), b3p)


# --------------------------------------------------------------------------- #
if __name__ == "__main__":
    batch = 8
    molvec_dim = 32
    classifier_dim = 64
    num_aux_task = 4

    key = jax.random.PRNGKey(0)
    k_x, k_p = jax.random.split(key)

    x = jax.random.normal(k_x, (batch, molvec_dim), dtype=jnp.float32)
    raw = make_raw_params(k_p, molvec_dim, classifier_dim, num_aux_task)
    fused = fold_and_pad_params(raw, compute_dtype=jnp.bfloat16)

    y = regressor_forward(x, fused, num_aux_task)
    jax.block_until_ready(y)

    # ---- Reference 1: original (unfused) f32 module math; loose tol for bf16
    (w1, b1, w2, b2, w3, b3, g1, be1, m1, v1, g2, be2, m2, v2) = raw
    h1 = jnp.maximum(x @ w1 + b1, 0.0)
    h1 = g1 * (h1 - m1) * jax.lax.rsqrt(v1 + BN_EPS) + be1
    h2 = jnp.maximum(h1 @ w2 + b2, 0.0)
    h2 = g2 * (h2 - m2) * jax.lax.rsqrt(v2 + BN_EPS) + be2
    ref_f32 = jnp.squeeze(h2 @ w3 + b3)
    assert jnp.allclose(y, ref_f32, atol=3e-2, rtol=3e-2), float(
        jnp.max(jnp.abs(y - ref_f32)))

    # ---- Reference 2: same folded bf16 params in plain JAX (tight check)
    fw1, fb1, fw2, fb2, fw3, fb3 = fused
    r1 = jnp.maximum(
        jnp.dot(x.astype(fw1.dtype), fw1, preferred_element_type=jnp.float32) + fb1, 0.0)
    r2 = jnp.maximum(
        jnp.dot(r1.astype(fw2.dtype), fw2, preferred_element_type=jnp.float32) + fb2, 0.0)
    r3 = jnp.dot(r2.astype(fw3.dtype), fw3, preferred_element_type=jnp.float32) + fb3
    ref_bf = jnp.squeeze(r3[:, :num_aux_task])
    assert jnp.allclose(y, ref_bf, atol=2e-3, rtol=2e-3), float(
        jnp.max(jnp.abs(y - ref_bf)))

    print("KERNEL_OK")
</pallas_src>

<mosaic_0001>
module attributes {stable_mosaic.version = 11 : i64} {
  func.func @regressor_kernel(%arg0: i32, %arg1: memref<8x32xbf16, #tpu.memory_space<vmem>>, %arg2: memref<32x64xbf16, #tpu.memory_space<vmem>>, %arg3: memref<1x64xf32, #tpu.memory_space<vmem>>, %arg4: memref<64x32xbf16, #tpu.memory_space<vmem>>, %arg5: memref<1x32xf32, #tpu.memory_space<vmem>>, %arg6: memref<32x128xbf16, #tpu.memory_space<vmem>>, %arg7: memref<1x128xf32, #tpu.memory_space<vmem>>, %arg8: memref<8x128xf32, #tpu.memory_space<vmem>>) attributes {dimension_semantics = [#tpu.dimension_semantics<parallel>], iteration_bounds = array<i64: 1>, scalar_prefetch = 0 : i64, scratch_operands = 0 : i64, tpu.core_type = #tpu.core_type<tc>, window_params = [{transform_indices = @transform_0, window_bounds = array<i64: 8, 32>}, {pipeline_mode = #tpu.pipeline_mode<synchronous>, transform_indices = @transform_1, window_bounds = array<i64: 32, 64>}, {pipeline_mode = #tpu.pipeline_mode<synchronous>, transform_indices = @transform_2, window_bounds = array<i64: 1, 64>}, {pipeline_mode = #tpu.pipeline_mode<synchronous>, transform_indices = @transform_3, window_bounds = array<i64: 64, 32>}, {pipeline_mode = #tpu.pipeline_mode<synchronous>, transform_indices = @transform_4, window_bounds = array<i64: 1, 32>}, {pipeline_mode = #tpu.pipeline_mode<synchronous>, transform_indices = @transform_5, window_bounds = array<i64: 32, 128>}, {pipeline_mode = #tpu.pipeline_mode<synchronous>, transform_indices = @transform_6, window_bounds = array<i64: 1, 128>}, {transform_indices = @transform_7, window_bounds = array<i64: 8, 128>}]} {
    %c0 = arith.constant 0 : index
    %c0_0 = arith.constant 0 : index
    %0 = vector.load %arg1[%c0, %c0_0] : memref<8x32xbf16, #tpu.memory_space<vmem>>, vector<8x32xbf16>
    %c0_1 = arith.constant 0 : index
    %c0_2 = arith.constant 0 : index
    %1 = vector.load %arg2[%c0_1, %c0_2] : memref<32x64xbf16, #tpu.memory_space<vmem>>, vector<32x64xbf16>
    %cst = arith.constant dense<0.000000e+00> : vector<8x64xf32>
    %2 = tpu.matmul %0, %1, %cst {dimension_numbers = #tpu.dot_dimension_numbers<[1], [0], [0], [1], [0, 0, 1, 1], [], []>} : vector<8x32xbf16>, vector<32x64xbf16>, vector<8x64xf32> -> vector<8x64xf32>
    %c0_3 = arith.constant 0 : index
    %c0_4 = arith.constant 0 : index
    %3 = vector.load %arg3[%c0_3, %c0_4] : memref<1x64xf32, #tpu.memory_space<vmem>>, vector<1x64xf32>
    %4 = vector.broadcast %3 : vector<1x64xf32> to vector<8x64xf32>
    %5 = arith.addf %2, %4 : vector<8x64xf32>
    %cst_5 = arith.constant 0.000000e+00 : f32
    %6 = vector.broadcast %cst_5 : f32 to vector<8x64xf32>
    %7 = arith.maximumf %5, %6 : vector<8x64xf32>
    %8 = arith.truncf %7 : vector<8x64xf32> to vector<8x64xbf16>
    %c0_6 = arith.constant 0 : index
    %c0_7 = arith.constant 0 : index
    %9 = vector.load %arg4[%c0_6, %c0_7] : memref<64x32xbf16, #tpu.memory_space<vmem>>, vector<64x32xbf16>
    %cst_8 = arith.constant dense<0.000000e+00> : vector<8x32xf32>
    %10 = tpu.matmul %8, %9, %cst_8 {dimension_numbers = #tpu.dot_dimension_numbers<[1], [0], [0], [1], [0, 0, 1, 1], [], []>} : vector<8x64xbf16>, vector<64x32xbf16>, vector<8x32xf32> -> vector<8x32xf32>
    %c0_9 = arith.constant 0 : index
    %c0_10 = arith.constant 0 : index
    %11 = vector.load %arg5[%c0_9, %c0_10] : memref<1x32xf32, #tpu.memory_space<vmem>>, vector<1x32xf32>
    %12 = vector.broadcast %11 : vector<1x32xf32> to vector<8x32xf32>
    %13 = arith.addf %10, %12 : vector<8x32xf32>
    %cst_11 = arith.constant 0.000000e+00 : f32
    %14 = vector.broadcast %cst_11 : f32 to vector<8x32xf32>
    %15 = arith.maximumf %13, %14 : vector<8x32xf32>
    %16 = arith.truncf %15 : vector<8x32xf32> to vector<8x32xbf16>
    %c0_12 = arith.constant 0 : index
    %c0_13 = arith.constant 0 : index
    %17 = vector.load %arg6[%c0_12, %c0_13] : memref<32x128xbf16, #tpu.memory_space<vmem>>, vector<32x128xbf16>
    %cst_14 = arith.constant dense<0.000000e+00> : vector<8x128xf32>
    %18 = tpu.matmul %16, %17, %cst_14 {dimension_numbers = #tpu.dot_dimension_numbers<[1], [0], [0], [1], [0, 0, 1, 1], [], []>} : vector<8x32xbf16>, vector<32x128xbf16>, vector<8x128xf32> -> vector<8x128xf32>
    %c0_15 = arith.constant 0 : index
    %c0_16 = arith.constant 0 : index
    %19 = vector.load %arg7[%c0_15, %c0_16] : memref<1x128xf32, #tpu.memory_space<vmem>>, vector<1x128xf32>
    %20 = vector.broadcast %19 : vector<1x128xf32> to vector<8x128xf32>
    %21 = arith.addf %18, %20 : vector<8x128xf32>
    %c0_17 = arith.constant 0 : index
    %c0_18 = arith.constant 0 : index
    %22 = vector.load %arg8[%c0_17, %c0_18] : memref<8x128xf32, #tpu.memory_space<vmem>>, vector<8x128xf32>
    tpu.vector_store %arg8[%c0_17, %c0_18], %21 {strides = array<i32>} : memref<8x128xf32, #tpu.memory_space<vmem>>, vector<8x128xf32>,
    return
  }
  func.func @transform_0(%arg0: i32) -> (i32, i32) {
    %c0_i32 = arith.constant 0 : i32
    %c0_i32_0 = arith.constant 0 : i32
    return %arg0, %c0_i32 : i32, i32
  }
  func.func @transform_1(%arg0: i32) -> (i32, i32) {
    %c0_i32 = arith.constant 0 : i32
    %c0_i32_0 = arith.constant 0 : i32
    %c0_i32_1 = arith.constant 0 : i32
    return %c0_i32, %c0_i32_0 : i32, i32
  }
  func.func @transform_2(%arg0: i32) -> (i32, i32) {
    %c0_i32 = arith.constant 0 : i32
    %c0_i32_0 = arith.constant 0 : i32
    %c0_i32_1 = arith.constant 0 : i32
    return %c0_i32, %c0_i32_0 : i32, i32
  }
  func.func @transform_3(%arg0: i32) -> (i32, i32) {
    %c0_i32 = arith.constant 0 : i32
    %c0_i32_0 = arith.constant 0 : i32
    %c0_i32_1 = arith.constant 0 : i32
    return %c0_i32, %c0_i32_0 : i32, i32
  }
  func.func @transform_4(%arg0: i32) -> (i32, i32) {
    %c0_i32 = arith.constant 0 : i32
    %c0_i32_0 = arith.constant 0 : i32
    %c0_i32_1 = arith.constant 0 : i32
    return %c0_i32, %c0_i32_0 : i32, i32
  }
  func.func @transform_5(%arg0: i32) -> (i32, i32) {
    %c0_i32 = arith.constant 0 : i32
    %c0_i32_0 = arith.constant 0 : i32
    %c0_i32_1 = arith.constant 0 : i32
    return %c0_i32, %c0_i32_0 : i32, i32
  }
  func.func @transform_6(%arg0: i32) -> (i32, i32) {
    %c0_i32 = arith.constant 0 : i32
    %c0_i32_0 = arith.constant 0 : i32
    %c0_i32_1 = arith.constant 0 : i32
    return %c0_i32, %c0_i32_0 : i32, i32
  }
  func.func @transform_7(%arg0: i32) -> (i32, i32) {
    %c0_i32 = arith.constant 0 : i32
    %c0_i32_0 = arith.constant 0 : i32
    return %arg0, %c0_i32 : i32, i32
  }
}

</mosaic_0001>

<llo_original>
// kernel: tpu_custom_call.1
$region0: #{tpu_custom_call.1}
  #allocation0 [shape = 'u32[]', space=smem, size = 0x4, offset = 0x4, fixed_abs, tag = 'smem constant byte address 0x4 - core index']
  #allocation1 [shape = 'u32[72,128]{1,0:T(1,128)}', space=vmem, size = 0x9000, scoped, tag = 'internal scratch']
  %s0 = inlined_call_operand.vmem [shape: bf16[8,32], index: 0, kind: input, shape index: {}]
  %s1 = inlined_call_operand.vmem [shape: bf16[32,64], index: 1, kind: input, shape index: {}]
  %s2 = inlined_call_operand.vmem [shape: f32[1,64], index: 2, kind: input, shape index: {}]
  %s3 = inlined_call_operand.vmem [shape: bf16[64,32], index: 3, kind: input, shape index: {}]
  %s4 = inlined_call_operand.vmem [shape: f32[1,32], index: 4, kind: input, shape index: {}]
  %s5 = inlined_call_operand.vmem [shape: bf16[32,128], index: 5, kind: input, shape index: {}]
  %s6 = inlined_call_operand.vmem [shape: f32[1,128], index: 6, kind: input, shape index: {}]
  %s7 = inlined_call_operand.hbm [shape: f32[8,128], index: 7, kind: output, shape index: {}]
  %s8 = sld [smem:[#allocation0]]
  $region38: #{tpu_custom_call.1} parent=0
    _
  %s10 = ssub.s32 1, %s8
  %s11 = scalar_select 0, %s10, %s8
  $region1: #{tpu_custom_call.1} parent=0
    #allocation2 [shape = 'u8[4096]{0}', space=vmem, size = 0x1000, scoped, tag = 'output window, operand 0, single buffered']
    #allocation3 [shape = 's32[1]{0}', space=sflag, size = 0x4, scoped, tag = 'scoped memory for tpu_custom_call.1']
    %12 = vsyncpa [#allocation3], 0
    // Predicated region
    $region2: #{tpu_custom_call.1} parent=1 // pred_check
      _
    $region3: #{tpu_custom_call.1} parent=1 // pred_check_branch
      %14 = sbr.rel (0) target = $region5
    $region4: #{tpu_custom_call.1} parent=1 // pred_region
      _
    $region5: #{tpu_custom_call.1} parent=1 // pred_fallthru
      _
    // Predicated region
    $region6: #{tpu_custom_call.1} parent=1 // pred_check
      _
    $region7: #{tpu_custom_call.1} parent=1 // pred_check_branch
      %16 = sbr.rel (0) target = $region9
    $region8: #{tpu_custom_call.1} parent=1 // pred_region
      _
    $region9: #{tpu_custom_call.1} parent=1 // pred_fallthru
      _
    // Predicated region
    $region10: #{tpu_custom_call.1} parent=1 // pred_check
      _
    $region11: #{tpu_custom_call.1} parent=1 // pred_check_branch
      %18 = sbr.rel (0) target = $region13
    $region12: #{tpu_custom_call.1} parent=1 // pred_region
      _
    $region13: #{tpu_custom_call.1} parent=1 // pred_fallthru
      _
    // Predicated region
    $region14: #{tpu_custom_call.1} parent=1 // pred_check
      _
    $region15: #{tpu_custom_call.1} parent=1 // pred_check_branch
      %20 = sbr.rel (0) target = $region17
    $region16: #{tpu_custom_call.1} parent=1 // pred_region
      _
    $region17: #{tpu_custom_call.1} parent=1 // pred_fallthru
      _
    // Predicated region
    $region18: #{tpu_custom_call.1} parent=1 // pred_check
      _
    $region19: #{tpu_custom_call.1} parent=1 // pred_check_branch
      %22 = sbr.rel (0) target = $region21
    $region20: #{tpu_custom_call.1} parent=1 // pred_region
      _
    $region21: #{tpu_custom_call.1} parent=1 // pred_fallthru
      _
    // Predicated region
    $region22: #{tpu_custom_call.1} parent=1 // pred_check
      _
    $region23: #{tpu_custom_call.1} parent=1 // pred_check_branch
      %24 = sbr.rel (0) target = $region25
    $region24: #{tpu_custom_call.1} parent=1 // pred_region
      _
    $region25: #{tpu_custom_call.1} parent=1 // pred_fallthru
      _
    // Predicated region
    $region26: #{tpu_custom_call.1} parent=1 // pred_check
      _
    $region27: #{tpu_custom_call.1} parent=1 // pred_check_branch
      %26 = sbr.rel (0) target = $region29
    $region28: #{tpu_custom_call.1} parent=1 // pred_region
      _
    $region29: #{tpu_custom_call.1} parent=1 // pred_fallthru
      _
    %v28 = vld [vmem:[%s0] sm:$0xf]
    %v29 = vld [vmem:[%s1] sm:$0xf]
    %v30 = vld [vmem:[%s1 + $0x4] sm:$0xf]
    %v31 = vld [vmem:[%s1 + $0x8] sm:$0xf]
    %v32 = vld [vmem:[%s1 + $0xc] sm:$0xf]
    %v33 = vld [vmem:[%s2] sm:$0x1]
    %v35 = vperm.slane %v33, 0
    %v41 = vunpack.c.l.b16 %v29
    %v42 = vunpack.c.l.b16 %v30
    %v43 = vunpack.c.l.b16 %v31
    %v44 = vunpack.c.l.b16 %v32
    %v45 = vpack.c.b16 %v42, %v41
    %v46 = vpack.c.b16 %v44, %v43
    %vm49 = vcmask 261120
    %v51 = vsel %vm49, %v28, 0
    %53 = vmatpush.bf16.msra.mxu0 0
    %54 = vmatpush.bf16.msra.mxu0 0
    %55 = vmatpush.bf16.msra.mxu0 0
    %56 = vmatpush.bf16.msra.mxu0 0
    %57 = vmatpush.bf16.msra.mxu0 0
    %58 = vmatpush.bf16.msra.mxu0 0
    %59 = vmatpush.bf16.msra.mxu0 %v46
    %60 = vmatpush.bf16.msra.mxu0 %v45
    %61 = vmatmul.bf16.gmra.mxu0 %v51
    %v62 = vpop.f32.mrf.mxu0
    %v63 = vadd.f32 %v35, %v62
    %v64 = vpop.f32.mrf.mxu0
    %65 = vdwg.mxu0
    %v66 = vmax.f32 %v63, 0.0
    %v67 = vpack.c.bf16 %v66, %v66
    %v68 = vld [vmem:[%s3] sm:$0xf]
    %v69 = vld [vmem:[%s3 + $0x4] sm:$0xf]
    %v70 = vld [vmem:[%s3 + $0x8] sm:$0xf]
    %v71 = vld [vmem:[%s3 + $0xc] sm:$0xf]
    %v72 = vld [vmem:[%s3 + $0x10] sm:$0xf]
    %v73 = vld [vmem:[%s3 + $0x14] sm:$0xf]
    %v74 = vld [vmem:[%s3 + $0x18] sm:$0xf]
    %v75 = vld [vmem:[%s3 + $0x1c] sm:$0xf]
    %v76 = vld [vmem:[%s4] sm:$0x1]
    %v78 = vperm.slane %v76, 0
    %v88 = vunpack.c.l.b16 %v68
    %v89 = vunpack.c.l.b16 %v69
    %v90 = vunpack.c.l.b16 %v70
    %v91 = vunpack.c.l.b16 %v71
    %v92 = vunpack.c.l.b16 %v72
    %v93 = vunpack.c.l.b16 %v73
    %v94 = vunpack.c.l.b16 %v74
    %v95 = vunpack.c.l.b16 %v75
    %v96 = vpack.c.b16 %v89, %v88
    %v97 = vpack.c.b16 %v91, %v90
    %v98 = vpack.c.b16 %v93, %v92
    %v99 = vpack.c.b16 %v95, %v94
    %vm104 = vcmask 523264
    %v106 = vsel %vm104, %v67, 0
    %108 = vmatpush.bf16.msra.mxu0 0
    %109 = vmatpush.bf16.msra.mxu0 0
    %110 = vmatpush.bf16.msra.mxu0 0
    %111 = vmatpush.bf16.msra.mxu0 0
    %112 = vmatpush.bf16.msra.mxu0 %v99
    %113 = vmatpush.bf16.msra.mxu0 %v98
    %114 = vmatpush.bf16.msra.mxu0 %v97
    %115 = vmatpush.bf16.msra.mxu0 %v96
    %116 = vmatmul.bf16.gmra.mxu0 %v106
    %v117 = vpop.f32.mrf.mxu0
    %v118 = vadd.f32 %v78, %v117
    %v119 = vpop.f32.mrf.mxu0
    %120 = vdwg.mxu0
    %v121 = vmax.f32 %v118, 0.0
    %v122 = vpack.c.bf16 %v121, %v121
    %v123 = vld [vmem:[%s5] sm:$0xf]
    %v124 = vld [vmem:[%s5 + $0x4] sm:$0xf]
    %v125 = vld [vmem:[%s5 + $0x8] sm:$0xf]
    %v126 = vld [vmem:[%s5 + $0xc] sm:$0xf]
    %v127 = vld [vmem:[%s6] sm:$0x1]
    %v129 = vperm.slane %v127, 0
    %v135 = vunpack.c.l.b16 %v123
    %v136 = vunpack.c.l.b16 %v124
    %v137 = vunpack.c.l.b16 %v125
    %v138 = vunpack.c.l.b16 %v126
    %v139 = vpack.c.b16 %v136, %v135
    %v140 = vpack.c.b16 %v138, %v137
    %v144 = vsel %vm49, %v122, 0
    %146 = vmatpush.bf16.msra.mxu0 0
    %147 = vmatpush.bf16.msra.mxu0 0
    %148 = vmatpush.bf16.msra.mxu0 0
    %149 = vmatpush.bf16.msra.mxu0 0
    %150 = vmatpush.bf16.msra.mxu0 0
    %151 = vmatpush.bf16.msra.mxu0 0
    %152 = vmatpush.bf16.msra.mxu0 %v140
    %153 = vmatpush.bf16.msra.mxu0 %v139
    %154 = vmatmul.bf16.gmra.mxu0 %v144
    %v155 = vpop.f32.mrf.mxu0
    %v156 = vadd.f32 %v129, %v155
    %v157 = vpop.f32.mrf.mxu0
    %158 = vdwg.mxu0
    %159 = vst [vmem:[#allocation2] sm:$0xff] %v156
    // Predicated region
    $region30: #{tpu_custom_call.1} parent=1 // pred_check
      _
    $region31: #{tpu_custom_call.1} parent=1 // pred_check_branch
      %161 = sbr.rel (0) target = $region33
    $region32: #{tpu_custom_call.1} parent=1 // pred_region
      %163 = vsyncadd [#allocation3], 0
      %s165 = sshll.u32 [#allocation2], 4
      %s166 = int_to_ptr.vmem [resolvable:$true] %s165
      %s167 = sshll.u32 %s7, 4
      %s168 = int_to_ptr.hbm [resolvable:$true] %s167
      %170 = dma.vmem_to_hbm [thread:$0]  %s166, 128, %s168, [#allocation3]
    $region33: #{tpu_custom_call.1} parent=1 // pred_fallthru
      _
    // Predicated region
    $region34: #{tpu_custom_call.1} parent=1 // pred_check
      _
    $region35: #{tpu_custom_call.1} parent=1 // pred_check_branch
      %172 = sbr.rel (0) target = $region37
    $region36: #{tpu_custom_call.1} parent=1 // pred_region
      %174 = dma.done [#allocation3], 128
    $region37: #{tpu_custom_call.1} parent=1 // pred_fallthru
      _
    %175 = vsyncpa [#allocation3], 1

</llo_original>
